<compile_context>
chip_gen: v5e
topology: v5e:2x2
jax: 0.10.0
libtpu: 0.0.40
codegen_flags: <defaults>
</compile_context>

<pallas_src>
import jax
import jax.numpy as jnp
from jax.experimental import pallas as pl
from jax.experimental.pallas import tpu as pltpu


# ------------------------------- helpers ---------------------------------
def _round_up(x, m):
    return ((x + m - 1) // m) * m


def _pad_to(a, shape):
    """Zero-pad array `a` up to `shape` (no-op if already that shape)."""
    if tuple(a.shape) == tuple(shape):
        return a
    out = jnp.zeros(shape, a.dtype)
    return out.at[tuple(slice(0, s) for s in a.shape)].set(a)


def _largest_tile(dim_p, cap, quantum):
    """Largest multiple of `quantum` that divides dim_p and is <= cap.

    `dim_p` must already be a multiple of `quantum`, so this always terminates
    (worst case it returns `quantum`).  Exact divisibility means the grid
    covers the padded problem with no wasted tail tiles.
    """
    cap = max(quantum, min(cap, dim_p))
    t = (cap // quantum) * quantum
    while dim_p % t != 0:
        t -= quantum
    return t


def _split_for_megacore(M_p, K_p, N_p, tm, tn, itemsize):
    """Ensure >=2 blocks along a 'parallel' axis so v7x's 2 TensorCores both work.

    Splitting M re-streams W once more per extra M block; splitting N
    re-streams X.  Pick the cheaper split, and only apply it if the extra HBM
    traffic is <=50% of the unavoidable traffic (so single-TC chips don't pay
    much for the v7x win).
    """
    if (M_p // tm) * (N_p // tn) >= 2:
        return tm, tn
    base_bytes = (M_p * K_p + K_p * N_p + M_p * N_p) * itemsize
    candidates = []
    if M_p >= 16:
        tm2 = _largest_tile(M_p, tm // 2, 8)
        if M_p // tm2 >= 2:
            extra = (M_p // tm2 - 1) * K_p * N_p * itemsize
            candidates.append((extra, tm2, tn))
    if N_p >= 256:
        tn2 = _largest_tile(N_p, tn // 2, 128)
        if N_p // tn2 >= 2:
            extra = (N_p // tn2 - 1) * M_p * K_p * itemsize
            candidates.append((extra, tm, tn2))
    if not candidates:
        return tm, tn
    extra, tm_new, tn_new = min(candidates)
    if extra <= 0.5 * base_bytes:
        return tm_new, tn_new
    return tm, tn


# ---------------------- single-block (gridless) path ----------------------
def _linear_kernel_small(x_ref, w_ref, b_ref, o_ref):
    # One MXU matmul with f32 accumulation + broadcast bias add (VPU).
    acc = jnp.dot(x_ref[...], w_ref[...], preferred_element_type=jnp.float32)
    o_ref[...] = acc + b_ref[...]


def _linear_small(x_p, w_p, b_p):
    B_p = x_p.shape[0]
    N_p = w_p.shape[1]
    return pl.pallas_call(
        _linear_kernel_small,
        out_shape=jax.ShapeDtypeStruct((B_p, N_p), jnp.float32),
        in_specs=[
            pl.BlockSpec(memory_space=pltpu.MemorySpace.VMEM),
            pl.BlockSpec(memory_space=pltpu.MemorySpace.VMEM),
            pl.BlockSpec(memory_space=pltpu.MemorySpace.VMEM),
        ],
        out_specs=pl.BlockSpec(memory_space=pltpu.MemorySpace.VMEM),
    )(x_p, w_p, b_p)


# -------------------------------- tiled path -------------------------------
def _linear_kernel_tiled(x_ref, w_ref, b_ref, o_ref):
    # Output block is resident across the innermost ("arbitrary") K axis, so
    # accumulate directly into the f32 output — no VMEM scratch accumulator.
    @pl.when(pl.program_id(2) == 0)
    def _():
        o_ref[...] = jnp.broadcast_to(b_ref[...], o_ref.shape)

    o_ref[...] += jnp.dot(x_ref[...], w_ref[...],
                          preferred_element_type=jnp.float32)


def _linear_tiled(x_p, w_p, b_p, tm, tn, tk):
    M, K = x_p.shape
    N = w_p.shape[1]
    # If a profile ever shows exposed weight DMA, add
    # pipeline_mode=pl.Buffered(3) to the W BlockSpec below.
    return pl.pallas_call(
        _linear_kernel_tiled,
        out_shape=jax.ShapeDtypeStruct((M, N), jnp.float32),
        grid=(M // tm, N // tn, K // tk),
        in_specs=[
            pl.BlockSpec((tm, tk), lambda i, j, k: (i, k)),
            pl.BlockSpec((tk, tn), lambda i, j, k: (k, j)),
            pl.BlockSpec((1, tn), lambda i, j, k: (0, j)),
        ],
        out_specs=pl.BlockSpec((tm, tn), lambda i, j, k: (i, j)),
        compiler_params=pltpu.CompilerParams(
            dimension_semantics=("parallel", "parallel", "arbitrary"),
            vmem_limit_bytes=32 * 1024 * 1024),
    )(x_p, w_p, b_p)


# Tile caps (multiples of the (8,128) layout quantum) and gridless threshold.
_TM_CAP, _TN_CAP, _TK_CAP = 512, 512, 1024
_GRIDLESS_BYTES = 2 * 1024 * 1024


def make_student_forward(w_t, b, *, compute_dtype=None):
    """Build the forward fn for Student.linear.

    w_t: [D_in, D_out] (= W.T), b: [D_out] or [1, D_out].
    Params are padded to the (8,128)-aligned layout and (optionally) cast to
    the compute dtype exactly once, here.
    """
    D_in, D_out = w_t.shape
    b = jnp.asarray(b).reshape(1, D_out)
    K_p = _round_up(D_in, 128)
    N_p = _round_up(D_out, 128)

    w_dtype = compute_dtype if compute_dtype is not None else w_t.dtype
    w_p = _pad_to(w_t, (K_p, N_p)).astype(w_dtype)
    b_p = _pad_to(b, (1, N_p)).astype(jnp.float32)

    def forward(x):
        B, d_in = x.shape
        assert d_in == D_in, f"expected input dim {D_in}, got {d_in}"
        B_p = _round_up(B, 8)
        x_dtype = compute_dtype if compute_dtype is not None else x.dtype
        x_p = _pad_to(x, (B_p, K_p)).astype(x_dtype)  # no-op when aligned

        in_item = jnp.dtype(x_dtype).itemsize
        total_bytes = ((B_p * K_p + K_p * N_p) * in_item
                       + (B_p * N_p + N_p) * 4)

        if total_bytes <= _GRIDLESS_BYTES:
            out_p = _linear_small(x_p, w_p, b_p)
        else:
            tm = _largest_tile(B_p, _TM_CAP, 8)     # M grid = 1 for typical batches
            tn = _largest_tile(N_p, _TN_CAP, 128)
            tk = _largest_tile(K_p, _TK_CAP, 128)
            tm, tn = _split_for_megacore(B_p, K_p, N_p, tm, tn, in_item)
            out_p = _linear_tiled(x_p, w_p, b_p, tm, tn, tk)

        return out_p[:B, :D_out]

    return forward


if __name__ == "__main__":
    key = jax.random.PRNGKey(0)

    # ---- Small case matching the PyTorch module defaults: Linear(10 -> 3), batch=8 ----
    input_dim, output_dim, batch = 10, 3, 8
    kx, kw, kb, k2 = jax.random.split(key, 4)

    # Deterministic init mirroring nn.Linear default: U(-1/sqrt(in), 1/sqrt(in)).
    bound = 1.0 / (input_dim ** 0.5)
    w = jax.random.uniform(kw, (output_dim, input_dim), jnp.float32, -bound, bound)
    b = jax.random.uniform(kb, (output_dim,), jnp.float32, -bound, bound)
    x = jax.random.normal(kx, (batch, input_dim), jnp.float32)

    fwd = jax.jit(make_student_forward(w.T, b))
    out = jax.block_until_ready(fwd(x))
    ref = x @ w.T + b
    assert out.shape == (batch, output_dim)
    assert jnp.allclose(out, ref, atol=1e-5, rtol=1e-5)

    # ---- Larger case -> tiled path; (320,1152,384) is already (8,128)-aligned,
    # so no padding at all and tiles divide the dims exactly.
    B2, K2, N2 = 320, 1152, 384
    kx2, kw2, kb2 = jax.random.split(k2, 3)
    bound2 = 1.0 / (K2 ** 0.5)
    w2_t = jax.random.uniform(kw2, (K2, N2), jnp.float32, -bound2, bound2)
    b2 = jax.random.uniform(kb2, (N2,), jnp.float32, -bound2, bound2)
    x2 = jax.random.normal(kx2, (B2, K2), jnp.float32)
    ref2 = x2 @ w2_t + b2

    fwd2 = jax.jit(make_student_forward(w2_t, b2))
    out2 = jax.block_until_ready(fwd2(x2))
    assert out2.shape == (B2, N2)
    assert jnp.allclose(out2, ref2, atol=2e-3, rtol=2e-3)

    # ---- Same shape with the bf16-compute option (f32 accumulation/output). ----
    fwd2_bf16 = jax.jit(make_student_forward(w2_t, b2, compute_dtype=jnp.bfloat16))
    out3 = jax.block_until_ready(fwd2_bf16(x2))
    assert out3.shape == (B2, N2)
    assert jnp.allclose(out3, ref2, atol=5e-2, rtol=5e-2)

    print("KERNEL_OK")
</pallas_src>

<mosaic_0001>
module attributes {stable_mosaic.version = 11 : i64} {
  func.func @_linear_kernel_small(%arg0: memref<8x128xf32, #tpu.memory_space<vmem>>, %arg1: memref<128x128xf32, #tpu.memory_space<vmem>>, %arg2: memref<1x128xf32, #tpu.memory_space<vmem>>, %arg3: memref<8x128xf32, #tpu.memory_space<vmem>>) attributes {dimension_semantics = [], scalar_prefetch = 0 : i64, scratch_operands = 0 : i64, tpu.core_type = #tpu.core_type<tc>} {
    %c0 = arith.constant 0 : index
    %c0_0 = arith.constant 0 : index
    %0 = vector.load %arg0[%c0, %c0_0] : memref<8x128xf32, #tpu.memory_space<vmem>>, vector<8x128xf32>
    %c0_1 = arith.constant 0 : index
    %c0_2 = arith.constant 0 : index
    %1 = vector.load %arg1[%c0_1, %c0_2] : memref<128x128xf32, #tpu.memory_space<vmem>>, vector<128x128xf32>
    %cst = arith.constant dense<0.000000e+00> : vector<8x128xf32>
    %2 = tpu.matmul %0, %1, %cst {dimension_numbers = #tpu.dot_dimension_numbers<[1], [0], [0], [1], [0, 0, 1, 1], [], []>} : vector<8x128xf32>, vector<128x128xf32>, vector<8x128xf32> -> vector<8x128xf32>
    %c0_3 = arith.constant 0 : index
    %c0_4 = arith.constant 0 : index
    %3 = vector.load %arg2[%c0_3, %c0_4] : memref<1x128xf32, #tpu.memory_space<vmem>>, vector<1x128xf32>
    %4 = vector.broadcast %3 : vector<1x128xf32> to vector<8x128xf32>
    %5 = arith.addf %2, %4 : vector<8x128xf32>
    %c0_5 = arith.constant 0 : index
    %c0_6 = arith.constant 0 : index
    %6 = vector.load %arg3[%c0_5, %c0_6] : memref<8x128xf32, #tpu.memory_space<vmem>>, vector<8x128xf32>
    tpu.vector_store %arg3[%c0_5, %c0_6], %5 {strides = array<i32>} : memref<8x128xf32, #tpu.memory_space<vmem>>, vector<8x128xf32>,
    return
  }
}

</mosaic_0001>

<llo_original>
// kernel: forward.1
$region0: #{forward.1}
  #allocation0 [shape = 'u32[]', space=smem, size = 0x4, offset = 0x4, fixed_abs, tag = 'smem constant byte address 0x4 - core index']
  #allocation1 [shape = 'u32[72,128]{1,0:T(1,128)}', space=vmem, size = 0x9000, scoped, tag = 'internal scratch']
  %s0 = inlined_call_operand.vmem [shape: f32[8,128], index: 0, kind: input, shape index: {}]
  %s1 = inlined_call_operand.hbm [shape: f32[128,128], index: 1, kind: input, shape index: {}]
  %s2 = inlined_call_operand.vmem [shape: f32[1,128], index: 2, kind: input, shape index: {}]
  %s3 = inlined_call_operand.vmem [shape: f32[8,128], index: 3, kind: output, shape index: {}]
  %s4 = sld [smem:[#allocation0]]
  $region26: #{forward.1} parent=0
    _
  %s6 = ssub.s32 1, %s4
  %s7 = scalar_select 0, %s6, %s4
  $region1: #{forward.1} parent=0
    #allocation2 [shape = 'u8[65536]{0}', space=vmem, size = 0x10000, scoped, tag = 'input window, operand 1, single buffered']
    #allocation3 [shape = 's32[1]{0}', space=sflag, size = 0x4, scoped, tag = 'scoped memory for forward.1']
    %8 = vsyncpa [#allocation3], 0
    // Predicated region
    $region2: #{forward.1} parent=1 // pred_check
      _
    $region3: #{forward.1} parent=1 // pred_check_branch
      %10 = sbr.rel (0) target = $region5
    $region4: #{forward.1} parent=1 // pred_region
      _
    $region5: #{forward.1} parent=1 // pred_fallthru
      _
    // Predicated region
    $region6: #{forward.1} parent=1 // pred_check
      _
    $region7: #{forward.1} parent=1 // pred_check_branch
      %12 = sbr.rel (0) target = $region9
    $region8: #{forward.1} parent=1 // pred_region
      %14 = vsyncadd [#allocation3], 0
      %s15 = sshll.u32 %s1, 4
      %s16 = int_to_ptr.hbm [resolvable:$true] %s15
      %s17 = sshll.u32 [#allocation2], 4
      %s18 = int_to_ptr.vmem [resolvable:$true] %s17
      %23 = dma.hbm_to_vmem [thread:$0]  %s16, 2048, %s18, [#allocation3], 128, 128, 8
    $region9: #{forward.1} parent=1 // pred_fallthru
      _
    // Predicated region
    $region10: #{forward.1} parent=1 // pred_check
      _
    $region11: #{forward.1} parent=1 // pred_check_branch
      %25 = sbr.rel (0) target = $region13
    $region12: #{forward.1} parent=1 // pred_region
      _
    $region13: #{forward.1} parent=1 // pred_fallthru
      _
    // Predicated region
    $region14: #{forward.1} parent=1 // pred_check
      _
    $region15: #{forward.1} parent=1 // pred_check_branch
      %27 = sbr.rel (0) target = $region17
    $region16: #{forward.1} parent=1 // pred_region
      %29 = dma.done [#allocation3], 2048
    $region17: #{forward.1} parent=1 // pred_fallthru
      _
    %v30 = vld [vmem:[%s0] sm:$0xff]
    %v31 = vld [vmem:[#allocation2] sm:$0xff]
    %v32 = vld [vmem:[#allocation2 + $0x8] sm:$0xff]
    %v33 = vld [vmem:[#allocation2 + $0x10] sm:$0xff]
    %v34 = vld [vmem:[#allocation2 + $0x18] sm:$0xff]
    %v35 = vld [vmem:[#allocation2 + $0x20] sm:$0xff]
    %v36 = vld [vmem:[#allocation2 + $0x28] sm:$0xff]
    %v37 = vld [vmem:[#allocation2 + $0x30] sm:$0xff]
    %v38 = vld [vmem:[#allocation2 + $0x38] sm:$0xff]
    %v39 = vld [vmem:[#allocation2 + $0x40] sm:$0xff]
    %v40 = vld [vmem:[#allocation2 + $0x48] sm:$0xff]
    %v41 = vld [vmem:[#allocation2 + $0x50] sm:$0xff]
    %v42 = vld [vmem:[#allocation2 + $0x58] sm:$0xff]
    %v43 = vld [vmem:[#allocation2 + $0x60] sm:$0xff]
    %v44 = vld [vmem:[#allocation2 + $0x68] sm:$0xff]
    %v45 = vld [vmem:[#allocation2 + $0x70] sm:$0xff]
    %v46 = vld [vmem:[#allocation2 + $0x78] sm:$0xff]
    %v47 = vld [vmem:[%s2] sm:$0x1]
    %v49 = vperm.slane %v47, 0
    %51 = vmatpush.msra.mxu0 %v46
    %52 = vmatpush.msra.mxu0 %v45
    %53 = vmatpush.msra.mxu0 %v44
    %54 = vmatpush.msra.mxu0 %v43
    %55 = vmatpush.msra.mxu0 %v42
    %56 = vmatpush.msra.mxu0 %v41
    %57 = vmatpush.msra.mxu0 %v40
    %58 = vmatpush.msra.mxu0 %v39
    %59 = vmatpush.msra.mxu0 %v38
    %60 = vmatpush.msra.mxu0 %v37
    %61 = vmatpush.msra.mxu0 %v36
    %62 = vmatpush.msra.mxu0 %v35
    %63 = vmatpush.msra.mxu0 %v34
    %64 = vmatpush.msra.mxu0 %v33
    %65 = vmatpush.msra.mxu0 %v32
    %66 = vmatpush.msra.mxu0 %v31
    %67 = vmatmul.f32.gmra.mxu0 %v30
    %v68 = vpop.f32.mrf.mxu0
    %v69 = vadd.f32 %v49, %v68
    %70 = vdwg.mxu0
    %71 = vst [vmem:[%s3] sm:$0xff] %v69
    // Predicated region
    $region18: #{forward.1} parent=1 // pred_check
      _
    $region19: #{forward.1} parent=1 // pred_check_branch
      %73 = sbr.rel (0) target = $region21
    $region20: #{forward.1} parent=1 // pred_region
      _
    $region21: #{forward.1} parent=1 // pred_fallthru
      _
    // Predicated region
    $region22: #{forward.1} parent=1 // pred_check
      _
    $region23: #{forward.1} parent=1 // pred_check_branch
      %75 = sbr.rel (0) target = $region25
    $region24: #{forward.1} parent=1 // pred_region
      _
    $region25: #{forward.1} parent=1 // pred_fallthru
      _
    %76 = vsyncpa [#allocation3], 1

</llo_original>
